<compile_context>
chip_gen: v7x
topology: tpu7x:2x2x1
jax: 0.10.0
libtpu: 0.0.40
codegen_flags: <defaults>
</compile_context>

<pallas_src>
import math
import functools

import jax
import jax.numpy as jnp
from jax import lax
from jax.experimental import pallas as pl
from jax.experimental.pallas import tpu as pltpu


# ----------------------------------------------------------------------------
# Kernel (transposed layout: rows of x live on the lane axis)
# ----------------------------------------------------------------------------
def _make_msc_kernel(step_size, lmbd, mu, n_steps, non_negative, square_noise,
                     n_dict):
    """Fused FISTA kernel with all hyper-params baked in as Python constants."""
    lambd_prox = lmbd * step_size              # elasnet_prox.lambd
    scaling_mu = 1.0 / (1.0 + mu * step_size)  # elasnet_prox.scaling_mu
    thr = lambd_prox * scaling_mu

    def prox(y):
        # softshrink(y * scaling_mu, lambd_prox * scaling_mu)
        z = y * scaling_mu
        return jnp.where(z > thr, z - thr, jnp.where(z < -thr, z + thr, 0.0))

    def kernel(x_ref, w_ref, wt_ref, c_ref, xp_ref, loss_ref):
        x = x_ref[...]          # [dim, TN]   (rows of the original x on lanes)
        w = w_ref[...]          # [K,  D]     (D = dim * n_dict)
        wt = wt_ref[...]        # [D,  K]

        # in-kernel n_dict replication (sublane concat) -> [D, TN]
        if n_dict > 1:
            x = jnp.concatenate([x] * n_dict, axis=0)

        def encode(v):   # (v_rows @ w^T)^T  ==  w  @ v : [K, TN]
            return jnp.dot(w, v, preferred_element_type=jnp.float32)

        def decode(ct):  # (c_rows @ w)^T    ==  w^T @ c^T : [D, TN]
            return jnp.dot(wt, ct, preferred_element_type=jnp.float32)

        def grad_dir(rt):
            if square_noise:
                return encode(rt)
            # per-row (now per-lane/column) L2 norm
            nrm = jnp.sqrt(jnp.sum(rt * rt, axis=0, keepdims=True))
            nrm = jnp.maximum(nrm, 1e-12)
            return encode(rt / nrm) * 0.5

        # ---------------- FISTA iterations (statically unrolled) -------------
        c = None
        c_pre = None
        t = 1.0
        for i in range(n_steps):
            if i == 0:
                c = prox(step_size * encode(x))
            elif i == 1:
                c_pre = c
                rt = x - decode(c)
                c = prox(c + step_size * grad_dir(rt))
                t = (math.sqrt(5.0) + 1.0) / 2.0
            else:
                t_pre = t
                t = (math.sqrt(1.0 + 4.0 * t_pre * t_pre) + 1.0) / 2.0
                a = (t_pre + t - 1.0) / t * c + (1.0 - t_pre) / t * c_pre
                c_pre = c
                rt = x - decode(c)
                c = prox(a + step_size * grad_dir(rt))
            if non_negative:
                c = jnp.maximum(c, 0.0)

        # ---------------- final reconstruction + per-tile loss partials ------
        xpt = decode(c)          # [D, TN]
        rt = x - xpt             # [D, TN]

        c_ref[...] = c           # [K, TN] lane-dense store
        xp_ref[...] = xpt        # [D, TN] lane-dense store

        # per-lane (per-row) partial sums; final reduce happens in the wrapper
        p_r = jnp.sum(rt * rt, axis=0, keepdims=True)       # (1, TN)
        p_ca = jnp.sum(jnp.abs(c), axis=0, keepdims=True)   # (1, TN)
        p_cs = jnp.sum(c * c, axis=0, keepdims=True)        # (1, TN)
        loss_ref[...] = jnp.concatenate([p_r, p_ca, p_cs], axis=0)  # (3, TN)

    return kernel


# ----------------------------------------------------------------------------
# Wrapper (layout plumbing: transpose / pad / final scalar arithmetic)
# ----------------------------------------------------------------------------
def msc_forward(x, weight, *, step_size=0.1, lmbd=0.1, mu=0.0, n_dict=1,
                n_steps=2, non_negative=True, square_noise=True, tile_n=512):
    orig_ndim = x.ndim
    if x.ndim == 2:
        bs, dim = x.shape
        token = None
        x_ = x
    elif x.ndim == 3:
        bs, token, dim = x.shape
        x_ = x.reshape(-1, dim)
    else:
        raise NotImplementedError

    x_ = x_.astype(jnp.float32)
    N = x_.shape[0]
    K, D = weight.shape
    assert D == dim * n_dict, "weight must be [dict_size, n_channel * n_dict]"

    # Lane-dense tile: multiple of 128, no more padding than necessary.
    tn = max(128, min(int(tile_n), ((N + 127) // 128) * 128))
    tn = ((tn + 127) // 128) * 128
    Np = ((N + tn - 1) // tn) * tn
    grid_n = Np // tn

    # Transposed, zero-padded input: [dim, Np].  Padded (zero) rows produce
    # c = xp = r = 0, so loss partials stay exact.
    x_t = jnp.pad(x_.T, ((0, 0), (0, Np - N)))

    w = weight.astype(jnp.float32)
    wt = w.T  # pre-transposed decode matrix; both stay resident in VMEM

    kernel = _make_msc_kernel(step_size, lmbd, mu, n_steps,
                              non_negative, square_noise, n_dict)

    c_t, xp_t, loss_p = pl.pallas_call(
        kernel,
        out_shape=(
            jax.ShapeDtypeStruct((K, Np), jnp.float32),   # c^T
            jax.ShapeDtypeStruct((D, Np), jnp.float32),   # xp^T
            jax.ShapeDtypeStruct((3, Np), jnp.float32),   # per-row loss partials
        ),
        grid=(grid_n,),
        in_specs=[
            pl.BlockSpec((dim, tn), lambda i: (0, i)),    # x tile (rows on lanes)
            pl.BlockSpec((K, D), lambda i: (0, 0)),       # dictionary (resident)
            pl.BlockSpec((D, K), lambda i: (0, 0)),       # dictionary^T (resident)
        ],
        out_specs=(
            pl.BlockSpec((K, tn), lambda i: (0, i)),
            pl.BlockSpec((D, tn), lambda i: (0, i)),
            pl.BlockSpec((3, tn), lambda i: (0, i)),
        ),
        compiler_params=pltpu.CompilerParams(
            dimension_semantics=("parallel",)),           # no revisited blocks
    )(x_t, w, wt)

    # Undo the transpose / padding (layout plumbing only).
    c = c_t[:, :N].T          # [N, K]
    xp = xp_t[:, :N].T        # [N, D]

    # Residual reconstructed lazily (kernel no longer writes it back).
    x_rep = x_ if n_dict == 1 else jnp.tile(x_, (1, n_dict))
    r = x_rep - xp            # [N, D]

    sums = jnp.sum(loss_p, axis=1)          # padded lanes contribute zeros
    r_loss = sums[0] / n_dict
    c_loss = lmbd * sums[1] + (mu / 2.0) * sums[2]

    if orig_ndim == 3:
        c = c.reshape(bs, token, -1)
        xp = xp.reshape(bs, token, -1)
    return c, xp, r, (r_loss, c_loss)


# ----------------------------------------------------------------------------
# Pure-JAX reference (mirrors the PyTorch forward, eval mode) for checking
# ----------------------------------------------------------------------------
def msc_forward_ref(x, weight, *, step_size=0.1, lmbd=0.1, mu=0.0, n_dict=1,
                    n_steps=2, non_negative=True, square_noise=True):
    lambd_prox = lmbd * step_size
    scaling_mu = 1.0 / (1.0 + mu * step_size)
    thr = lambd_prox * scaling_mu

    def prox(y):
        z = y * scaling_mu
        return jnp.where(z > thr, z - thr, jnp.where(z < -thr, z + thr, 0.0))

    orig_ndim = x.ndim
    if x.ndim == 3:
        bs, token, dim = x.shape
        x_ = x.reshape(-1, dim)
    else:
        bs, dim = x.shape
        x_ = x
    xr = jnp.tile(x_, (1, n_dict)).astype(jnp.float32)
    w = weight.astype(jnp.float32)

    c = c_pre = None
    t = 1.0
    for i in range(n_steps):
        if i == 0:
            c = prox(step_size * (xr @ w.T))
        elif i == 1:
            c_pre = c
            r = xr - c @ w
            g = r @ w.T if square_noise else \
                (r / jnp.maximum(jnp.linalg.norm(r, axis=1, keepdims=True), 1e-12)) @ w.T * 0.5
            c = prox(c + step_size * g)
            t = (math.sqrt(5.0) + 1.0) / 2.0
        else:
            t_pre = t
            t = (math.sqrt(1.0 + 4.0 * t_pre * t_pre) + 1.0) / 2.0
            a = (t_pre + t - 1.0) / t * c + (1.0 - t_pre) / t * c_pre
            c_pre = c
            r = xr - c @ w
            g = r @ w.T if square_noise else \
                (r / jnp.maximum(jnp.linalg.norm(r, axis=1, keepdims=True), 1e-12)) @ w.T * 0.5
            c = prox(a + step_size * g)
        if non_negative:
            c = jnp.maximum(c, 0.0)

    xp = c @ w
    r = xr - xp
    r_loss = jnp.sum(r * r) / n_dict
    c_loss = lmbd * jnp.sum(jnp.abs(c)) + mu / 2.0 * jnp.sum(c * c)
    if orig_ndim == 3:
        c = c.reshape(bs, token, -1)
        xp = xp.reshape(bs, token, -1)
    return c, xp, r, (r_loss, c_loss)


# ----------------------------------------------------------------------------
if __name__ == "__main__":
    key = jax.random.PRNGKey(0)
    k_w, k_x, k_w2, k_x2 = jax.random.split(key, 4)

    # ---- Config 1: module defaults (n_dict=1, square_noise=True) -----------
    n_channel, dict_size, n_dict = 32, 64, 1
    mu, lmbd, step_size, n_steps = 0.0, 0.1, 0.1, 2
    fan_in = n_channel * n_dict
    bound = math.sqrt(6.0 / fan_in)   # kaiming_uniform-style bound
    weight = jax.random.uniform(k_w, (dict_size, n_channel * n_dict),
                                dtype=jnp.float32, minval=-bound, maxval=bound)
    bs, token = 2, 8
    x = jax.random.normal(k_x, (bs, token, n_channel), dtype=jnp.float32)

    run = functools.partial(msc_forward, step_size=step_size, lmbd=lmbd, mu=mu,
                            n_dict=n_dict, n_steps=n_steps,
                            non_negative=True, square_noise=True, tile_n=512)
    c, xp, r, (r_loss, c_loss) = jax.block_until_ready(run(x, weight))
    c_r, xp_r, r_r, (rl_r, cl_r) = msc_forward_ref(
        x, weight, step_size=step_size, lmbd=lmbd, mu=mu, n_dict=n_dict,
        n_steps=n_steps, non_negative=True, square_noise=True)

    assert c.shape == (bs, token, dict_size)
    assert xp.shape == (bs, token, n_channel * n_dict)
    assert r.shape == (bs * token, n_channel * n_dict)
    assert jnp.allclose(c, c_r, atol=1e-5, rtol=1e-5)
    assert jnp.allclose(xp, xp_r, atol=1e-5, rtol=1e-5)
    assert jnp.allclose(r, r_r, atol=1e-5, rtol=1e-5)
    assert jnp.allclose(r_loss, rl_r, atol=1e-4, rtol=1e-4)
    assert jnp.allclose(c_loss, cl_r, atol=1e-4, rtol=1e-4)

    # ---- Config 2: n_dict=2, square_noise=False, n_steps=3, mu>0, 2-D x ----
    n_dict2, mu2, n_steps2 = 2, 0.05, 3
    weight2 = jax.random.uniform(k_w2, (dict_size, n_channel * n_dict2),
                                 dtype=jnp.float32, minval=-bound, maxval=bound)
    x2 = jax.random.normal(k_x2, (16, n_channel), dtype=jnp.float32)

    c2, xp2, r2, (rl2, cl2) = jax.block_until_ready(
        msc_forward(x2, weight2, step_size=step_size, lmbd=lmbd, mu=mu2,
                    n_dict=n_dict2, n_steps=n_steps2, non_negative=False,
                    square_noise=False, tile_n=512))
    c2r, xp2r, r2r, (rl2r, cl2r) = msc_forward_ref(
        x2, weight2, step_size=step_size, lmbd=lmbd, mu=mu2, n_dict=n_dict2,
        n_steps=n_steps2, non_negative=False, square_noise=False)

    assert c2.shape == (16, dict_size)
    assert xp2.shape == (16, n_channel * n_dict2)
    assert jnp.allclose(c2, c2r, atol=1e-5, rtol=1e-5)
    assert jnp.allclose(xp2, xp2r, atol=1e-5, rtol=1e-5)
    assert jnp.allclose(r2, r2r, atol=1e-5, rtol=1e-5)
    assert jnp.allclose(rl2, rl2r, atol=1e-4, rtol=1e-4)
    assert jnp.allclose(cl2, cl2r, atol=1e-4, rtol=1e-4)

    print("KERNEL_OK")
</pallas_src>

<mosaic_0001>
module attributes {stable_mosaic.version = 11 : i64} {
  func.func @kernel(%arg0: i32, %arg1: memref<32x128xf32, #tpu.memory_space<vmem>>, %arg2: memref<64x32xf32, #tpu.memory_space<vmem>>, %arg3: memref<32x64xf32, #tpu.memory_space<vmem>>, %arg4: memref<64x128xf32, #tpu.memory_space<vmem>>, %arg5: memref<32x128xf32, #tpu.memory_space<vmem>>, %arg6: memref<3x128xf32, #tpu.memory_space<vmem>>) attributes {dimension_semantics = [#tpu.dimension_semantics<parallel>], iteration_bounds = array<i64: 1>, scalar_prefetch = 0 : i64, scratch_operands = 0 : i64, tpu.core_type = #tpu.core_type<tc>, window_params = [{transform_indices = @transform_0, window_bounds = array<i64: 32, 128>}, {pipeline_mode = #tpu.pipeline_mode<synchronous>, transform_indices = @transform_1, window_bounds = array<i64: 64, 32>}, {pipeline_mode = #tpu.pipeline_mode<synchronous>, transform_indices = @transform_2, window_bounds = array<i64: 32, 64>}, {transform_indices = @transform_3, window_bounds = array<i64: 64, 128>}, {transform_indices = @transform_4, window_bounds = array<i64: 32, 128>}, {transform_indices = @transform_5, window_bounds = array<i64: 3, 128>}]} {
    %c0 = arith.constant 0 : index
    %c0_0 = arith.constant 0 : index
    %0 = vector.load %arg1[%c0, %c0_0] : memref<32x128xf32, #tpu.memory_space<vmem>>, vector<32x128xf32>
    %c0_1 = arith.constant 0 : index
    %c0_2 = arith.constant 0 : index
    %1 = vector.load %arg2[%c0_1, %c0_2] : memref<64x32xf32, #tpu.memory_space<vmem>>, vector<64x32xf32>
    %c0_3 = arith.constant 0 : index
    %c0_4 = arith.constant 0 : index
    %2 = vector.load %arg3[%c0_3, %c0_4] : memref<32x64xf32, #tpu.memory_space<vmem>>, vector<32x64xf32>
    %cst = arith.constant dense<0.000000e+00> : vector<64x128xf32>
    %3 = tpu.matmul %1, %0, %cst {dimension_numbers = #tpu.dot_dimension_numbers<[1], [0], [0], [1], [0, 0, 1, 1], [], []>} : vector<64x32xf32>, vector<32x128xf32>, vector<64x128xf32> -> vector<64x128xf32>
    %cst_5 = arith.constant 1.000000e-01 : f32
    %4 = vector.broadcast %cst_5 : f32 to vector<64x128xf32>
    %5 = arith.mulf %4, %3 : vector<64x128xf32>
    %cst_6 = arith.constant 1.000000e+00 : f32
    %6 = vector.broadcast %cst_6 : f32 to vector<64x128xf32>
    %7 = arith.mulf %5, %6 : vector<64x128xf32>
    %cst_7 = arith.constant 0.00999999977 : f32
    %8 = vector.broadcast %cst_7 : f32 to vector<64x128xf32>
    %9 = arith.cmpf ogt, %7, %8 : vector<64x128xf32>
    %cst_8 = arith.constant 0.00999999977 : f32
    %10 = vector.broadcast %cst_8 : f32 to vector<64x128xf32>
    %11 = arith.subf %7, %10 : vector<64x128xf32>
    %cst_9 = arith.constant -0.00999999977 : f32
    %12 = vector.broadcast %cst_9 : f32 to vector<64x128xf32>
    %13 = arith.cmpf olt, %7, %12 : vector<64x128xf32>
    %cst_10 = arith.constant 0.00999999977 : f32
    %14 = vector.broadcast %cst_10 : f32 to vector<64x128xf32>
    %15 = arith.addf %7, %14 : vector<64x128xf32>
    %cst_11 = arith.constant 0.000000e+00 : f32
    %16 = vector.broadcast %cst_11 : f32 to vector<64x128xf32>
    %17 = arith.select %13, %15, %16 : vector<64x128xi1>, vector<64x128xf32>
    %18 = arith.select %9, %11, %17 : vector<64x128xi1>, vector<64x128xf32>
    %cst_12 = arith.constant 0.000000e+00 : f32
    %19 = vector.broadcast %cst_12 : f32 to vector<64x128xf32>
    %20 = arith.maximumf %18, %19 : vector<64x128xf32>
    %cst_13 = arith.constant dense<0.000000e+00> : vector<32x128xf32>
    %21 = tpu.matmul %2, %20, %cst_13 {dimension_numbers = #tpu.dot_dimension_numbers<[1], [0], [0], [1], [0, 0, 1, 1], [], []>} : vector<32x64xf32>, vector<64x128xf32>, vector<32x128xf32> -> vector<32x128xf32>
    %22 = arith.subf %0, %21 : vector<32x128xf32>
    %cst_14 = arith.constant dense<0.000000e+00> : vector<64x128xf32>
    %23 = tpu.matmul %1, %22, %cst_14 {dimension_numbers = #tpu.dot_dimension_numbers<[1], [0], [0], [1], [0, 0, 1, 1], [], []>} : vector<64x32xf32>, vector<32x128xf32>, vector<64x128xf32> -> vector<64x128xf32>
    %cst_15 = arith.constant 1.000000e-01 : f32
    %24 = vector.broadcast %cst_15 : f32 to vector<64x128xf32>
    %25 = arith.mulf %24, %23 : vector<64x128xf32>
    %26 = arith.addf %20, %25 : vector<64x128xf32>
    %cst_16 = arith.constant 1.000000e+00 : f32
    %27 = vector.broadcast %cst_16 : f32 to vector<64x128xf32>
    %28 = arith.mulf %26, %27 : vector<64x128xf32>
    %cst_17 = arith.constant 0.00999999977 : f32
    %29 = vector.broadcast %cst_17 : f32 to vector<64x128xf32>
    %30 = arith.cmpf ogt, %28, %29 : vector<64x128xf32>
    %cst_18 = arith.constant 0.00999999977 : f32
    %31 = vector.broadcast %cst_18 : f32 to vector<64x128xf32>
    %32 = arith.subf %28, %31 : vector<64x128xf32>
    %cst_19 = arith.constant -0.00999999977 : f32
    %33 = vector.broadcast %cst_19 : f32 to vector<64x128xf32>
    %34 = arith.cmpf olt, %28, %33 : vector<64x128xf32>
    %cst_20 = arith.constant 0.00999999977 : f32
    %35 = vector.broadcast %cst_20 : f32 to vector<64x128xf32>
    %36 = arith.addf %28, %35 : vector<64x128xf32>
    %cst_21 = arith.constant 0.000000e+00 : f32
    %37 = vector.broadcast %cst_21 : f32 to vector<64x128xf32>
    %38 = arith.select %34, %36, %37 : vector<64x128xi1>, vector<64x128xf32>
    %39 = arith.select %30, %32, %38 : vector<64x128xi1>, vector<64x128xf32>
    %cst_22 = arith.constant 0.000000e+00 : f32
    %40 = vector.broadcast %cst_22 : f32 to vector<64x128xf32>
    %41 = arith.maximumf %39, %40 : vector<64x128xf32>
    %cst_23 = arith.constant dense<0.000000e+00> : vector<32x128xf32>
    %42 = tpu.matmul %2, %41, %cst_23 {dimension_numbers = #tpu.dot_dimension_numbers<[1], [0], [0], [1], [0, 0, 1, 1], [], []>} : vector<32x64xf32>, vector<64x128xf32>, vector<32x128xf32> -> vector<32x128xf32>
    %43 = arith.subf %0, %42 : vector<32x128xf32>
    %c0_24 = arith.constant 0 : index
    %c0_25 = arith.constant 0 : index
    %44 = vector.load %arg4[%c0_24, %c0_25] : memref<64x128xf32, #tpu.memory_space<vmem>>, vector<64x128xf32>
    tpu.vector_store %arg4[%c0_24, %c0_25], %41 {strides = array<i32>} : memref<64x128xf32, #tpu.memory_space<vmem>>, vector<64x128xf32>,
    %c0_26 = arith.constant 0 : index
    %c0_27 = arith.constant 0 : index
    %45 = vector.load %arg5[%c0_26, %c0_27] : memref<32x128xf32, #tpu.memory_space<vmem>>, vector<32x128xf32>
    tpu.vector_store %arg5[%c0_26, %c0_27], %42 {strides = array<i32>} : memref<32x128xf32, #tpu.memory_space<vmem>>, vector<32x128xf32>,
    %46 = arith.mulf %43, %43 : vector<32x128xf32>
    %cst_28 = arith.constant dense<0.000000e+00> : vector<128xf32>
    %47 = vector.multi_reduction <add>, %46, %cst_28 [0] : vector<32x128xf32> to vector<128xf32>
    %48 = vector.shape_cast %47 : vector<128xf32> to vector<1x128xf32>
    %49 = math.absf %41 : vector<64x128xf32>
    %cst_29 = arith.constant dense<0.000000e+00> : vector<128xf32>
    %50 = vector.multi_reduction <add>, %49, %cst_29 [0] : vector<64x128xf32> to vector<128xf32>
    %51 = vector.shape_cast %50 : vector<128xf32> to vector<1x128xf32>
    %52 = arith.mulf %41, %41 : vector<64x128xf32>
    %cst_30 = arith.constant dense<0.000000e+00> : vector<128xf32>
    %53 = vector.multi_reduction <add>, %52, %cst_30 [0] : vector<64x128xf32> to vector<128xf32>
    %54 = vector.shape_cast %53 : vector<128xf32> to vector<1x128xf32>
    %55 = tpu.concatenate %48, %51, %54 in 0 : vector<1x128xf32>, vector<1x128xf32>, vector<1x128xf32> -> vector<3x128xf32>
    %c0_31 = arith.constant 0 : index
    %c0_32 = arith.constant 0 : index
    %56 = vector.load %arg6[%c0_31, %c0_32] : memref<3x128xf32, #tpu.memory_space<vmem>>, vector<3x128xf32>
    tpu.vector_store %arg6[%c0_31, %c0_32], %55 {strides = array<i32>} : memref<3x128xf32, #tpu.memory_space<vmem>>, vector<3x128xf32>,
    return
  }
  func.func @transform_0(%arg0: i32) -> (i32, i32) {
    %c0_i32 = arith.constant 0 : i32
    %c0_i32_0 = arith.constant 0 : i32
    return %c0_i32, %arg0 : i32, i32
  }
  func.func @transform_1(%arg0: i32) -> (i32, i32) {
    %c0_i32 = arith.constant 0 : i32
    %c0_i32_0 = arith.constant 0 : i32
    %c0_i32_1 = arith.constant 0 : i32
    return %c0_i32, %c0_i32_0 : i32, i32
  }
  func.func @transform_2(%arg0: i32) -> (i32, i32) {
    %c0_i32 = arith.constant 0 : i32
    %c0_i32_0 = arith.constant 0 : i32
    %c0_i32_1 = arith.constant 0 : i32
    return %c0_i32, %c0_i32_0 : i32, i32
  }
  func.func @transform_3(%arg0: i32) -> (i32, i32) {
    %c0_i32 = arith.constant 0 : i32
    %c0_i32_0 = arith.constant 0 : i32
    return %c0_i32, %arg0 : i32, i32
  }
  func.func @transform_4(%arg0: i32) -> (i32, i32) {
    %c0_i32 = arith.constant 0 : i32
    %c0_i32_0 = arith.constant 0 : i32
    return %c0_i32, %arg0 : i32, i32
  }
  func.func @transform_5(%arg0: i32) -> (i32, i32) {
    %c0_i32 = arith.constant 0 : i32
    %c0_i32_0 = arith.constant 0 : i32
    return %c0_i32, %arg0 : i32, i32
  }
}

</mosaic_0001>

<llo_original>
// kernel: tpu_custom_call.1
$region0: #{tpu_custom_call.1}
  #allocation0 [shape = 'u32[]', space=smem, size = 0x4, offset = 0x4, fixed_abs, tag = 'smem constant byte address 0x4 - core index']
  #allocation1 [shape = 'u32[144,128]{1,0:T(1,128)}', space=vmem, size = 0x12000, scoped, tag = 'internal scratch']
  %s0 = inlined_call_operand.vmem [shape: f32[32,128], index: 0, kind: input, shape index: {}]
  %s1 = inlined_call_operand.vmem [shape: f32[64,32], index: 1, kind: input, shape index: {}]
  %s2 = inlined_call_operand.vmem [shape: f32[32,64], index: 2, kind: input, shape index: {}]
  %s3 = inlined_call_operand.hbm [shape: f32[64,128], index: 3, kind: output, shape index: {0}]
  %s4 = inlined_call_operand.hbm [shape: f32[32,128], index: 4, kind: output, shape index: {1}]
  %s5 = inlined_call_operand.hbm [shape: f32[3,128], index: 5, kind: output, shape index: {2}]
  %6 = xla_tuple %s3, %s4, %s5
  %s7 = sld [smem:[#allocation0]]
  $region38: #{tpu_custom_call.1} parent=0
    _
  %s9 = ssub.s32 1, %s7
  %s10 = scalar_select 0, %s9, %s7
  $region1: #{tpu_custom_call.1} parent=0
    #allocation2 [shape = 'u8[32768]{0}', space=vmem, size = 0x8000, scoped, tag = 'output window, operand 0, single buffered']
    #allocation3 [shape = 's32[1]{0}', space=sflag, size = 0x4, scoped, tag = 'scoped memory for tpu_custom_call.1']
    #allocation4 [shape = 'u8[16384]{0}', space=vmem, size = 0x4000, scoped, tag = 'output window, operand 1, single buffered']
    #allocation5 [shape = 's32[1]{0}', space=sflag, size = 0x4, scoped, tag = 'scoped memory for tpu_custom_call.1']
    #allocation6 [shape = 'u8[2048]{0}', space=vmem, size = 0x800, scoped, tag = 'output window, operand 2, single buffered']
    %11 = vsyncpa [#allocation3], 0
    %12 = vsyncpa [#allocation5], 0
    // Predicated region
    $region2: #{tpu_custom_call.1} parent=1 // pred_check
      _
    $region3: #{tpu_custom_call.1} parent=1 // pred_check_branch
      %14 = sbr.rel (0) target = $region5
    $region4: #{tpu_custom_call.1} parent=1 // pred_region
      _
    $region5: #{tpu_custom_call.1} parent=1 // pred_fallthru
      _
    // Predicated region
    $region6: #{tpu_custom_call.1} parent=1 // pred_check
      _
    $region7: #{tpu_custom_call.1} parent=1 // pred_check_branch
      %16 = sbr.rel (0) target = $region9
    $region8: #{tpu_custom_call.1} parent=1 // pred_region
      _
    $region9: #{tpu_custom_call.1} parent=1 // pred_fallthru
      _
    // Predicated region
    $region10: #{tpu_custom_call.1} parent=1 // pred_check
      _
    $region11: #{tpu_custom_call.1} parent=1 // pred_check_branch
      %18 = sbr.rel (0) target = $region13
    $region12: #{tpu_custom_call.1} parent=1 // pred_region
      _
    $region13: #{tpu_custom_call.1} parent=1 // pred_fallthru
      _
    %v19 = vld [vmem:[%s0] sm:$0xff]
    %v20 = vld [vmem:[%s0 + $0x8] sm:$0xff]
    %v21 = vld [vmem:[%s0 + $0x10] sm:$0xff]
    %v22 = vld [vmem:[%s0 + $0x18] sm:$0xff]
    %v23 = vld [vmem:[%s1] sm:$0xff]
    %v24 = vld [vmem:[%s1 + $0x8] sm:$0xff]
    %v25 = vld [vmem:[%s1 + $0x10] sm:$0xff]
    %v26 = vld [vmem:[%s1 + $0x18] sm:$0xff]
    %v27 = vld [vmem:[%s1 + $0x20] sm:$0xff]
    %v28 = vld [vmem:[%s1 + $0x28] sm:$0xff]
    %v29 = vld [vmem:[%s1 + $0x30] sm:$0xff]
    %v30 = vld [vmem:[%s1 + $0x38] sm:$0xff]
    %v31 = vld [vmem:[%s2] sm:$0xff]
    %v32 = vld [vmem:[%s2 + $0x8] sm:$0xff]
    %v33 = vld [vmem:[%s2 + $0x10] sm:$0xff]
    %v34 = vld [vmem:[%s2 + $0x18] sm:$0xff]
    %vm35 = vcmask 261120
    %v37 = vsel %vm35, %v23, 0
    %v40 = vsel %vm35, %v24, 0
    %v43 = vsel %vm35, %v25, 0
    %v46 = vsel %vm35, %v26, 0
    %v49 = vsel %vm35, %v27, 0
    %v52 = vsel %vm35, %v28, 0
    %v55 = vsel %vm35, %v29, 0
    %v58 = vsel %vm35, %v30, 0
    %60 = vmatprep.subr.mxu0 0.0
    %61 = vmatpush1.msra.mxu0 %v19
    %62 = vmatprep.subr.mxu0 0.0
    %63 = vmatpush1.msra.mxu0 %v20
    %64 = vmatprep.subr.mxu0 0.0
    %65 = vmatpush1.msra.mxu0 %v21
    %66 = vmatprep.subr.mxu0 0.0
    %67 = vmatpush1.msra.mxu0 %v22
    %68 = vmatprep.subr.mxu0 0.0
    %69 = vmatpush1.msra.mxu0 0.0
    %70 = vmatprep.subr.mxu0 0.0
    %71 = vmatpush1.msra.mxu0 0.0
    %72 = vmatprep.subr.mxu0 0.0
    %73 = vmatpush1.msra.mxu0 0.0
    %74 = vmatprep.subr.mxu0 0.0
    %75 = vmatpush1.msra.mxu0 0.0
    %76 = vmatprep.subr.mxu0 0.0
    %77 = vmatpush1.msra.mxu0 0.0
    %78 = vmatprep.subr.mxu0 0.0
    %79 = vmatpush1.msra.mxu0 0.0
    %80 = vmatprep.subr.mxu0 0.0
    %81 = vmatpush1.msra.mxu0 0.0
    %82 = vmatprep.subr.mxu0 0.0
    %83 = vmatpush1.msra.mxu0 0.0
    %84 = vmatprep.subr.mxu0 0.0
    %85 = vmatpush1.msra.mxu0 0.0
    %86 = vmatprep.subr.mxu0 0.0
    %87 = vmatpush1.msra.mxu0 0.0
    %88 = vmatprep.subr.mxu0 0.0
    %89 = vmatpush1.msra.mxu0 0.0
    %90 = vmatprep.subr.mxu0 0.0
    %91 = vmatpush1.msra.mxu0 0.0
    %92 = vmatprep.subr.mxu0 0.0
    %93 = vmatpush1.msra.mxu0 0.0
    %94 = vmatprep.subr.mxu0 0.0
    %95 = vmatpush1.msra.mxu0 0.0
    %96 = vmatprep.subr.mxu0 0.0
    %97 = vmatpush1.msra.mxu0 0.0
    %98 = vmatprep.subr.mxu0 0.0
    %99 = vmatpush1.msra.mxu0 0.0
    %100 = vmatprep.subr.mxu0 0.0
    %101 = vmatpush1.msra.mxu0 0.0
    %102 = vmatprep.subr.mxu0 0.0
    %103 = vmatpush1.msra.mxu0 0.0
    %104 = vmatprep.subr.mxu0 0.0
    %105 = vmatpush1.msra.mxu0 0.0
    %106 = vmatprep.subr.mxu0 0.0
    %107 = vmatpush1.msra.mxu0 0.0
    %108 = vmatprep.subr.mxu0 0.0
    %109 = vmatpush1.msra.mxu0 0.0
    %110 = vmatprep.subr.mxu0 0.0
    %111 = vmatpush1.msra.mxu0 0.0
    %112 = vmatprep.subr.mxu0 0.0
    %113 = vmatpush1.msra.mxu0 0.0
    %114 = vmatprep.subr.mxu0 0.0
    %115 = vmatpush1.msra.mxu0 0.0
    %116 = vmatprep.subr.mxu0 0.0
    %117 = vmatpush1.msra.mxu0 0.0
    %118 = vmatprep.subr.mxu0 0.0
    %119 = vmatpush1.msra.mxu0 0.0
    %120 = vmatprep.subr.mxu0 0.0
    %121 = vmatpush1.msra.mxu0 0.0
    %122 = vmatprep.subr.mxu0 0.0
    %123 = vmatpush1.msra.mxu0 0.0
    %124 = vmatprep.mubr.f32.mxu0 0.0
    %125 = vmatmul.mubr.f32.gmra.mrb[0].mxu0 %v37
    %v126 = vpop.f32.mrb[0].mxu0
    %v127 = vadd.f32 0.0, %v126
    %v128 = vpop.f32.mrb[0].mxu0
    %129 = vmatprep.mubr.f32.mxu0 0.0
    %130 = vmatmul.mubr.f32.gmra.mrb[0].mxu0 %v40
    %v131 = vpop.f32.mrb[0].mxu0
    %v132 = vadd.f32 0.0, %v131
    %v133 = vpop.f32.mrb[0].mxu0
    %134 = vmatprep.mubr.f32.mxu0 0.0
    %135 = vmatmul.mubr.f32.gmra.mrb[0].mxu0 %v43
    %v136 = vpop.f32.mrb[0].mxu0
    %v137 = vadd.f32 0.0, %v136
    %v138 = vpop.f32.mrb[0].mxu0
    %139 = vmatprep.mubr.f32.mxu0 0.0
    %140 = vmatmul.mubr.f32.gmra.mrb[0].mxu0 %v46
    %v141 = vpop.f32.mrb[0].mxu0
    %v142 = vadd.f32 0.0, %v141
    %v143 = vpop.f32.mrb[0].mxu0
    %144 = vmatprep.mubr.f32.mxu0 0.0
    %145 = vmatmul.mubr.f32.gmra.mrb[0].mxu0 %v49
    %v146 = vpop.f32.mrb[0].mxu0
    %v147 = vadd.f32 0.0, %v146
    %v148 = vpop.f32.mrb[0].mxu0
    %149 = vmatprep.mubr.f32.mxu0 0.0
    %150 = vmatmul.mubr.f32.gmra.mrb[0].mxu0 %v52
    %v151 = vpop.f32.mrb[0].mxu0
    %v152 = vadd.f32 0.0, %v151
    %v153 = vpop.f32.mrb[0].mxu0
    %154 = vmatprep.mubr.f32.mxu0 0.0
    %155 = vmatmul.mubr.f32.gmra.mrb[0].mxu0 %v55
    %v156 = vpop.f32.mrb[0].mxu0
    %v157 = vadd.f32 0.0, %v156
    %v158 = vpop.f32.mrb[0].mxu0
    %159 = vmatprep.mubr.f32.mxu0 0.0
    %160 = vmatmul.mubr.f32.gmra.mrb[0].mxu0 %v58
    %v161 = vpop.f32.mrb[0].mxu0
    %v162 = vadd.f32 0.0, %v161
    %v163 = vpop.f32.mrb[0].mxu0
    %164 = vdwg.mxu0
    %v165 = vmul.f32 %v127, 0.1
    %v166 = vmul.f32 %v132, 0.1
    %v167 = vmul.f32 %v137, 0.1
    %v168 = vmul.f32 %v142, 0.1
    %v169 = vmul.f32 %v147, 0.1
    %v170 = vmul.f32 %v152, 0.1
    %v171 = vmul.f32 %v157, 0.1
    %v172 = vmul.f32 %v162, 0.1
    %vm173 = vcmp.gt.f32.partialorder %v165, 0.01
    %vm174 = vcmp.gt.f32.partialorder %v166, 0.01
    %vm175 = vcmp.gt.f32.partialorder %v167, 0.01
    %vm176 = vcmp.gt.f32.partialorder %v168, 0.01
    %vm177 = vcmp.gt.f32.partialorder %v169, 0.01
    %vm178 = vcmp.gt.f32.partialorder %v170, 0.01
    %vm179 = vcmp.gt.f32.partialorder %v171, 0.01
    %vm180 = vcmp.gt.f32.partialorder %v172, 0.01
    %v181 = vsub.f32 %v165, 0.01
    %v182 = vsub.f32 %v166, 0.01
    %v183 = vsub.f32 %v167, 0.01
    %v184 = vsub.f32 %v168, 0.01
    %v185 = vsub.f32 %v169, 0.01
    %v186 = vsub.f32 %v170, 0.01
    %v187 = vsub.f32 %v171, 0.01
    %v188 = vsub.f32 %v172, 0.01
    %vm189 = vcmp.lt.f32.partialorder %v165, -0.01
    %vm190 = vcmp.lt.f32.partialorder %v166, -0.01
    %vm191 = vcmp.lt.f32.partialorder %v167, -0.01
    %vm192 = vcmp.lt.f32.partialorder %v168, -0.01
    %vm193 = vcmp.lt.f32.partialorder %v169, -0.01
    %vm194 = vcmp.lt.f32.partialorder %v170, -0.01
    %vm195 = vcmp.lt.f32.partialorder %v171, -0.01
    %vm196 = vcmp.lt.f32.partialorder %v172, -0.01
    %v197 = vadd.f32 %v165, 0.01
    %v198 = vadd.f32 %v166, 0.01
    %v199 = vadd.f32 %v167, 0.01
    %v200 = vadd.f32 %v168, 0.01
    %v201 = vadd.f32 %v169, 0.01
    %v202 = vadd.f32 %v170, 0.01
    %v203 = vadd.f32 %v171, 0.01
    %v204 = vadd.f32 %v172, 0.01
    %v205 = vsel %vm189, %v197, 0.0
    %v206 = vsel %vm190, %v198, 0.0
    %v207 = vsel %vm191, %v199, 0.0
    %v208 = vsel %vm192, %v200, 0.0
    %v209 = vsel %vm193, %v201, 0.0
    %v210 = vsel %vm194, %v202, 0.0
    %v211 = vsel %vm195, %v203, 0.0
    %v212 = vsel %vm196, %v204, 0.0
    %v213 = vsel %vm173, %v181, %v205
    %v214 = vsel %vm174, %v182, %v206
    %v215 = vsel %vm175, %v183, %v207
    %v216 = vsel %vm176, %v184, %v208
    %v217 = vsel %vm177, %v185, %v209
    %v218 = vsel %vm178, %v186, %v210
    %v219 = vsel %vm179, %v187, %v211
    %v220 = vsel %vm180, %v188, %v212
    %v221 = vmax.f32 %v213, 0.0
    %v222 = vmax.f32 %v214, 0.0
    %v223 = vmax.f32 %v215, 0.0
    %v224 = vmax.f32 %v216, 0.0
    %v225 = vmax.f32 %v217, 0.0
    %v226 = vmax.f32 %v218, 0.0
    %v227 = vmax.f32 %v219, 0.0
    %v228 = vmax.f32 %v220, 0.0
    %vm229 = vcmask 523264
    %v231 = vsel %vm229, %v31, 0
    %v234 = vsel %vm229, %v32, 0
    %v237 = vsel %vm229, %v33, 0
    %v240 = vsel %vm229, %v34, 0
    %242 = vmatprep.subr.mxu0 0.0
    %243 = vmatpush1.msra.mxu0 %v221
    %244 = vmatprep.subr.mxu0 0.0
    %245 = vmatpush1.msra.mxu0 %v222
    %246 = vmatprep.subr.mxu0 0.0
    %247 = vmatpush1.msra.mxu0 %v223
    %248 = vmatprep.subr.mxu0 0.0
    %249 = vmatpush1.msra.mxu0 %v224
    %250 = vmatprep.subr.mxu0 0.0
    %251 = vmatpush1.msra.mxu0 %v225
    %252 = vmatprep.subr.mxu0 0.0
    %253 = vmatpush1.msra.mxu0 %v226
    %254 = vmatprep.subr.mxu0 0.0
    %255 = vmatpush1.msra.mxu0 %v227
    %256 = vmatprep.subr.mxu0 0.0
    %257 = vmatpush1.msra.mxu0 %v228
    %258 = vmatprep.subr.mxu0 0.0
    %259 = vmatpush1.msra.mxu0 0.0
    %260 = vmatprep.subr.mxu0 0.0
    %261 = vmatpush1.msra.mxu0 0.0
    %262 = vmatprep.subr.mxu0 0.0
    %263 = vmatpush1.msra.mxu0 0.0
    %264 = vmatprep.subr.mxu0 0.0
    %265 = vmatpush1.msra.mxu0 0.0
    %266 = vmatprep.subr.mxu0 0.0
    %267 = vmatpush1.msra.mxu0 0.0
    %268 = vmatprep.subr.mxu0 0.0
    %269 = vmatpush1.msra.mxu0 0.0
    %270 = vmatprep.subr.mxu0 0.0
    %271 = vmatpush1.msra.mxu0 0.0
    %272 = vmatprep.subr.mxu0 0.0
    %273 = vmatpush1.msra.mxu0 0.0
    %274 = vmatprep.subr.mxu0 0.0
    %275 = vmatpush1.msra.mxu0 0.0
    %276 = vmatprep.subr.mxu0 0.0
    %277 = vmatpush1.msra.mxu0 0.0
    %278 = vmatprep.subr.mxu0 0.0
    %279 = vmatpush1.msra.mxu0 0.0
    %280 = vmatprep.subr.mxu0 0.0
    %281 = vmatpush1.msra.mxu0 0.0
    %282 = vmatprep.subr.mxu0 0.0
    %283 = vmatpush1.msra.mxu0 0.0
    %284 = vmatprep.subr.mxu0 0.0
    %285 = vmatpush1.msra.mxu0 0.0
    %286 = vmatprep.subr.mxu0 0.0
    %287 = vmatpush1.msra.mxu0 0.0
    %288 = vmatprep.subr.mxu0 0.0
    %289 = vmatpush1.msra.mxu0 0.0
    %290 = vmatprep.subr.mxu0 0.0
    %291 = vmatpush1.msra.mxu0 0.0
    %292 = vmatprep.subr.mxu0 0.0
    %293 = vmatpush1.msra.mxu0 0.0
    %294 = vmatprep.subr.mxu0 0.0
    %295 = vmatpush1.msra.mxu0 0.0
    %296 = vmatprep.subr.mxu0 0.0
    %297 = vmatpush1.msra.mxu0 0.0
    %298 = vmatprep.subr.mxu0 0.0
    %299 = vmatpush1.msra.mxu0 0.0
    %300 = vmatprep.subr.mxu0 0.0
    %301 = vmatpush1.msra.mxu0 0.0
    %302 = vmatprep.subr.mxu0 0.0
    %303 = vmatpush1.msra.mxu0 0.0
    %304 = vmatprep.subr.mxu0 0.0
    %305 = vmatpush1.msra.mxu0 0.0
    %306 = vmatprep.mubr.f32.mxu0 0.0
    %307 = vmatmul.mubr.f32.gmra.mrb[0].mxu0 %v231
    %v308 = vpop.f32.mrb[0].mxu0
    %v309 = vadd.f32 0.0, %v308
    %v310 = vpop.f32.mrb[0].mxu0
    %311 = vmatprep.mubr.f32.mxu0 0.0
    %312 = vmatmul.mubr.f32.gmra.mrb[0].mxu0 %v234
    %v313 = vpop.f32.mrb[0].mxu0
    %v314 = vadd.f32 0.0, %v313
    %v315 = vpop.f32.mrb[0].mxu0
    %316 = vmatprep.mubr.f32.mxu0 0.0
    %317 = vmatmul.mubr.f32.gmra.mrb[0].mxu0 %v237
    %v318 = vpop.f32.mrb[0].mxu0
    %v319 = vadd.f32 0.0, %v318
    %v320 = vpop.f32.mrb[0].mxu0
    %321 = vmatprep.mubr.f32.mxu0 0.0
    %322 = vmatmul.mubr.f32.gmra.mrb[0].mxu0 %v240
    %v323 = vpop.f32.mrb[0].mxu0
    %v324 = vadd.f32 0.0, %v323
    %v325 = vpop.f32.mrb[0].mxu0
    %326 = vdwg.mxu0
    %v327 = vsub.f32 %v19, %v309
    %v328 = vsub.f32 %v20, %v314
    %v329 = vsub.f32 %v21, %v319
    %v330 = vsub.f32 %v22, %v324
    %331 = vmatprep.subr.mxu0 0.0
    %332 = vmatpush1.msra.mxu0 %v327
    %333 = vmatprep.subr.mxu0 0.0
    %334 = vmatpush1.msra.mxu0 %v328
    %335 = vmatprep.subr.mxu0 0.0
    %336 = vmatpush1.msra.mxu0 %v329
    %337 = vmatprep.subr.mxu0 0.0
    %338 = vmatpush1.msra.mxu0 %v330
    %339 = vmatprep.subr.mxu0 0.0
    %340 = vmatpush1.msra.mxu0 0.0
    %341 = vmatprep.subr.mxu0 0.0
    %342 = vmatpush1.msra.mxu0 0.0
    %343 = vmatprep.subr.mxu0 0.0
    %344 = vmatpush1.msra.mxu0 0.0
    %345 = vmatprep.subr.mxu0 0.0
    %346 = vmatpush1.msra.mxu0 0.0
    %347 = vmatprep.subr.mxu0 0.0
    %348 = vmatpush1.msra.mxu0 0.0
    %349 = vmatprep.subr.mxu0 0.0
    %350 = vmatpush1.msra.mxu0 0.0
    %351 = vmatprep.subr.mxu0 0.0
    %352 = vmatpush1.msra.mxu0 0.0
    %353 = vmatprep.subr.mxu0 0.0
    %354 = vmatpush1.msra.mxu0 0.0
    %355 = vmatprep.subr.mxu0 0.0
    %356 = vmatpush1.msra.mxu0 0.0
    %357 = vmatprep.subr.mxu0 0.0
    %358 = vmatpush1.msra.mxu0 0.0
    %359 = vmatprep.subr.mxu0 0.0
    %360 = vmatpush1.msra.mxu0 0.0
    %361 = vmatprep.subr.mxu0 0.0
    %362 = vmatpush1.msra.mxu0 0.0
    %363 = vmatprep.subr.mxu0 0.0
    %364 = vmatpush1.msra.mxu0 0.0
    %365 = vmatprep.subr.mxu0 0.0
    %366 = vmatpush1.msra.mxu0 0.0
    %367 = vmatprep.subr.mxu0 0.0
    %368 = vmatpush1.msra.mxu0 0.0
    %369 = vmatprep.subr.mxu0 0.0
    %370 = vmatpush1.msra.mxu0 0.0
    %371 = vmatprep.subr.mxu0 0.0
    %372 = vmatpush1.msra.mxu0 0.0
    %373 = vmatprep.subr.mxu0 0.0
    %374 = vmatpush1.msra.mxu0 0.0
    %375 = vmatprep.subr.mxu0 0.0
    %376 = vmatpush1.msra.mxu0 0.0
    %377 = vmatprep.subr.mxu0 0.0
    %378 = vmatpush1.msra.mxu0 0.0
    %379 = vmatprep.subr.mxu0 0.0
    %380 = vmatpush1.msra.mxu0 0.0
    %381 = vmatprep.subr.mxu0 0.0
    %382 = vmatpush1.msra.mxu0 0.0
    %383 = vmatprep.subr.mxu0 0.0
    %384 = vmatpush1.msra.mxu0 0.0
    %385 = vmatprep.subr.mxu0 0.0
    %386 = vmatpush1.msra.mxu0 0.0
    %387 = vmatprep.subr.mxu0 0.0
    %388 = vmatpush1.msra.mxu0 0.0
    %389 = vmatprep.subr.mxu0 0.0
    %390 = vmatpush1.msra.mxu0 0.0
    %391 = vmatprep.subr.mxu0 0.0
    %392 = vmatpush1.msra.mxu0 0.0
    %393 = vmatprep.subr.mxu0 0.0
    %394 = vmatpush1.msra.mxu0 0.0
    %395 = vmatprep.mubr.f32.mxu0 0.0
    %396 = vmatmul.mubr.f32.gmra.mrb[0].mxu0 %v37
    %v397 = vpop.f32.mrb[0].mxu0
    %v398 = vadd.f32 0.0, %v397
    %v399 = vpop.f32.mrb[0].mxu0
    %400 = vmatprep.mubr.f32.mxu0 0.0
    %401 = vmatmul.mubr.f32.gmra.mrb[0].mxu0 %v40
    %v402 = vpop.f32.mrb[0].mxu0
    %v403 = vadd.f32 0.0, %v402
    %v404 = vpop.f32.mrb[0].mxu0
    %405 = vmatprep.mubr.f32.mxu0 0.0
    %406 = vmatmul.mubr.f32.gmra.mrb[0].mxu0 %v43
    %v407 = vpop.f32.mrb[0].mxu0
    %v408 = vadd.f32 0.0, %v407
    %v409 = vpop.f32.mrb[0].mxu0
    %410 = vmatprep.mubr.f32.mxu0 0.0
    %411 = vmatmul.mubr.f32.gmra.mrb[0].mxu0 %v46
    %v412 = vpop.f32.mrb[0].mxu0
    %v413 = vadd.f32 0.0, %v412
    %v414 = vpop.f32.mrb[0].mxu0
    %415 = vmatprep.mubr.f32.mxu0 0.0
    %416 = vmatmul.mubr.f32.gmra.mrb[0].mxu0 %v49
    %v417 = vpop.f32.mrb[0].mxu0
    %v418 = vadd.f32 0.0, %v417
    %v419 = vpop.f32.mrb[0].mxu0
    %420 = vmatprep.mubr.f32.mxu0 0.0
    %421 = vmatmul.mubr.f32.gmra.mrb[0].mxu0 %v52
    %v422 = vpop.f32.mrb[0].mxu0
    %v423 = vadd.f32 0.0, %v422
    %v424 = vpop.f32.mrb[0].mxu0
    %425 = vmatprep.mubr.f32.mxu0 0.0
    %426 = vmatmul.mubr.f32.gmra.mrb[0].mxu0 %v55
    %v427 = vpop.f32.mrb[0].mxu0
    %v428 = vadd.f32 0.0, %v427
    %v429 = vpop.f32.mrb[0].mxu0
    %430 = vmatprep.mubr.f32.mxu0 0.0
    %431 = vmatmul.mubr.f32.gmra.mrb[0].mxu0 %v58
    %v432 = vpop.f32.mrb[0].mxu0
    %v433 = vadd.f32 0.0, %v432
    %v434 = vpop.f32.mrb[0].mxu0
    %435 = vdwg.mxu0
    %v436 = vmul.f32 %v398, 0.1
    %v437 = vmul.f32 %v403, 0.1
    %v438 = vmul.f32 %v408, 0.1
    %v439 = vmul.f32 %v413, 0.1
    %v440 = vmul.f32 %v418, 0.1
    %v441 = vmul.f32 %v423, 0.1
    %v442 = vmul.f32 %v428, 0.1
    %v443 = vmul.f32 %v433, 0.1
    %v444 = vadd.f32 %v221, %v436
    %v445 = vadd.f32 %v222, %v437
    %v446 = vadd.f32 %v223, %v438
    %v447 = vadd.f32 %v224, %v439
    %v448 = vadd.f32 %v225, %v440
    %v449 = vadd.f32 %v226, %v441
    %v450 = vadd.f32 %v227, %v442
    %v451 = vadd.f32 %v228, %v443
    %vm452 = vcmp.gt.f32.partialorder %v444, 0.01
    %vm453 = vcmp.gt.f32.partialorder %v445, 0.01
    %vm454 = vcmp.gt.f32.partialorder %v446, 0.01
    %vm455 = vcmp.gt.f32.partialorder %v447, 0.01
    %vm456 = vcmp.gt.f32.partialorder %v448, 0.01
    %vm457 = vcmp.gt.f32.partialorder %v449, 0.01
    %vm458 = vcmp.gt.f32.partialorder %v450, 0.01
    %vm459 = vcmp.gt.f32.partialorder %v451, 0.01
    %v460 = vsub.f32 %v444, 0.01
    %v461 = vsub.f32 %v445, 0.01
    %v462 = vsub.f32 %v446, 0.01
    %v463 = vsub.f32 %v447, 0.01
    %v464 = vsub.f32 %v448, 0.01
    %v465 = vsub.f32 %v449, 0.01
    %v466 = vsub.f32 %v450, 0.01
    %v467 = vsub.f32 %v451, 0.01
    %vm468 = vcmp.lt.f32.partialorder %v444, -0.01
    %vm469 = vcmp.lt.f32.partialorder %v445, -0.01
    %vm470 = vcmp.lt.f32.partialorder %v446, -0.01
    %vm471 = vcmp.lt.f32.partialorder %v447, -0.01
    %vm472 = vcmp.lt.f32.partialorder %v448, -0.01
    %vm473 = vcmp.lt.f32.partialorder %v449, -0.01
    %vm474 = vcmp.lt.f32.partialorder %v450, -0.01
    %vm475 = vcmp.lt.f32.partialorder %v451, -0.01
    %v476 = vadd.f32 %v444, 0.01
    %v477 = vadd.f32 %v445, 0.01
    %v478 = vadd.f32 %v446, 0.01
    %v479 = vadd.f32 %v447, 0.01
    %v480 = vadd.f32 %v448, 0.01
    %v481 = vadd.f32 %v449, 0.01
    %v482 = vadd.f32 %v450, 0.01
    %v483 = vadd.f32 %v451, 0.01
    %v484 = vsel %vm468, %v476, 0.0
    %v485 = vsel %vm469, %v477, 0.0
    %v486 = vsel %vm470, %v478, 0.0
    %v487 = vsel %vm471, %v479, 0.0
    %v488 = vsel %vm472, %v480, 0.0
    %v489 = vsel %vm473, %v481, 0.0
    %v490 = vsel %vm474, %v482, 0.0
    %v491 = vsel %vm475, %v483, 0.0
    %v492 = vsel %vm452, %v460, %v484
    %v493 = vsel %vm453, %v461, %v485
    %v494 = vsel %vm454, %v462, %v486
    %v495 = vsel %vm455, %v463, %v487
    %v496 = vsel %vm456, %v464, %v488
    %v497 = vsel %vm457, %v465, %v489
    %v498 = vsel %vm458, %v466, %v490
    %v499 = vsel %vm459, %v467, %v491
    %v500 = vmax.f32 %v492, 0.0
    %v501 = vmax.f32 %v493, 0.0
    %v502 = vmax.f32 %v494, 0.0
    %v503 = vmax.f32 %v495, 0.0
    %v504 = vmax.f32 %v496, 0.0
    %v505 = vmax.f32 %v497, 0.0
    %v506 = vmax.f32 %v498, 0.0
    %v507 = vmax.f32 %v499, 0.0
    %508 = vmatprep.subr.mxu0 0.0
    %509 = vmatpush1.msra.mxu0 %v500
    %510 = vmatprep.subr.mxu0 0.0
    %511 = vmatpush1.msra.mxu0 %v501
    %512 = vmatprep.subr.mxu0 0.0
    %513 = vmatpush1.msra.mxu0 %v502
    %514 = vmatprep.subr.mxu0 0.0
    %515 = vmatpush1.msra.mxu0 %v503
    %516 = vmatprep.subr.mxu0 0.0
    %517 = vmatpush1.msra.mxu0 %v504
    %518 = vmatprep.subr.mxu0 0.0
    %519 = vmatpush1.msra.mxu0 %v505
    %520 = vmatprep.subr.mxu0 0.0
    %521 = vmatpush1.msra.mxu0 %v506
    %522 = vmatprep.subr.mxu0 0.0
    %523 = vmatpush1.msra.mxu0 %v507
    %524 = vmatprep.subr.mxu0 0.0
    %525 = vmatpush1.msra.mxu0 0.0
    %526 = vmatprep.subr.mxu0 0.0
    %527 = vmatpush1.msra.mxu0 0.0
    %528 = vmatprep.subr.mxu0 0.0
    %529 = vmatpush1.msra.mxu0 0.0
    %530 = vmatprep.subr.mxu0 0.0
    %531 = vmatpush1.msra.mxu0 0.0
    %532 = vmatprep.subr.mxu0 0.0
    %533 = vmatpush1.msra.mxu0 0.0
    %534 = vmatprep.subr.mxu0 0.0
    %535 = vmatpush1.msra.mxu0 0.0
    %536 = vmatprep.subr.mxu0 0.0
    %537 = vmatpush1.msra.mxu0 0.0
    %538 = vmatprep.subr.mxu0 0.0
    %539 = vmatpush1.msra.mxu0 0.0
    %540 = vmatprep.subr.mxu0 0.0
    %541 = vmatpush1.msra.mxu0 0.0
    %542 = vmatprep.subr.mxu0 0.0
    %543 = vmatpush1.msra.mxu0 0.0
    %544 = vmatprep.subr.mxu0 0.0
    %545 = vmatpush1.msra.mxu0 0.0
    %546 = vmatprep.subr.mxu0 0.0
    %547 = vmatpush1.msra.mxu0 0.0
    %548 = vmatprep.subr.mxu0 0.0
    %549 = vmatpush1.msra.mxu0 0.0
    %550 = vmatprep.subr.mxu0 0.0
    %551 = vmatpush1.msra.mxu0 0.0
    %552 = vmatprep.subr.mxu0 0.0
    %553 = vmatpush1.msra.mxu0 0.0
    %554 = vmatprep.subr.mxu0 0.0
    %555 = vmatpush1.msra.mxu0 0.0
    %556 = vmatprep.subr.mxu0 0.0
    %557 = vmatpush1.msra.mxu0 0.0
    %558 = vmatprep.subr.mxu0 0.0
    %559 = vmatpush1.msra.mxu0 0.0
    %560 = vmatprep.subr.mxu0 0.0
    %561 = vmatpush1.msra.mxu0 0.0
    %562 = vmatprep.subr.mxu0 0.0
    %563 = vmatpush1.msra.mxu0 0.0
    %564 = vmatprep.subr.mxu0 0.0
    %565 = vmatpush1.msra.mxu0 0.0
    %566 = vmatprep.subr.mxu0 0.0
    %567 = vmatpush1.msra.mxu0 0.0
    %568 = vmatprep.subr.mxu0 0.0
    %569 = vmatpush1.msra.mxu0 0.0
    %570 = vmatprep.subr.mxu0 0.0
    %571 = vmatpush1.msra.mxu0 0.0
    %572 = vmatprep.mubr.f32.mxu0 0.0
    %573 = vmatmul.mubr.f32.gmra.mrb[0].mxu0 %v231
    %v574 = vpop.f32.mrb[0].mxu0
    %v575 = vadd.f32 0.0, %v574
    %v576 = vpop.f32.mrb[0].mxu0
    %577 = vmatprep.mubr.f32.mxu0 0.0
    %578 = vmatmul.mubr.f32.gmra.mrb[0].mxu0 %v234
    %v579 = vpop.f32.mrb[0].mxu0
    %v580 = vadd.f32 0.0, %v579
    %v581 = vpop.f32.mrb[0].mxu0
    %582 = vmatprep.mubr.f32.mxu0 0.0
    %583 = vmatmul.mubr.f32.gmra.mrb[0].mxu0 %v237
    %v584 = vpop.f32.mrb[0].mxu0
    %v585 = vadd.f32 0.0, %v584
    %v586 = vpop.f32.mrb[0].mxu0
    %587 = vmatprep.mubr.f32.mxu0 0.0
    %588 = vmatmul.mubr.f32.gmra.mrb[0].mxu0 %v240
    %v589 = vpop.f32.mrb[0].mxu0
    %v590 = vadd.f32 0.0, %v589
    %v591 = vpop.f32.mrb[0].mxu0
    %592 = vdwg.mxu0
    %v593 = vsub.f32 %v19, %v575
    %v594 = vsub.f32 %v20, %v580
    %v595 = vsub.f32 %v21, %v585
    %v596 = vsub.f32 %v22, %v590
    %597 = vst [vmem:[#allocation2] sm:$0xff] %v500
    %598 = vst [vmem:[#allocation2 + $0x8] sm:$0xff] %v501
    %599 = vst [vmem:[#allocation2 + $0x10] sm:$0xff] %v502
    %600 = vst [vmem:[#allocation2 + $0x18] sm:$0xff] %v503
    %601 = vst [vmem:[#allocation2 + $0x20] sm:$0xff] %v504
    %602 = vst [vmem:[#allocation2 + $0x28] sm:$0xff] %v505
    %603 = vst [vmem:[#allocation2 + $0x30] sm:$0xff] %v506
    %604 = vst [vmem:[#allocation2 + $0x38] sm:$0xff] %v507
    %605 = vst [vmem:[#allocation4] sm:$0xff] %v575
    %606 = vst [vmem:[#allocation4 + $0x8] sm:$0xff] %v580
    %607 = vst [vmem:[#allocation4 + $0x10] sm:$0xff] %v585
    %608 = vst [vmem:[#allocation4 + $0x18] sm:$0xff] %v590
    %v609 = vmul.f32 %v593, %v593
    %v610 = vmul.f32 %v594, %v594
    %v611 = vmul.f32 %v595, %v595
    %v612 = vmul.f32 %v596, %v596
    %v613 = vadd.f32 %v609, %v610
    %v614 = vadd.f32 %v613, %v611
    %v615 = vadd.f32 %v614, %v612
    %v616 = vrot.slane %v615, 4
    %v617 = vadd.f32 %v615, %v616
    %v618 = vrot.slane %v617, 2
    %v619 = vadd.f32 %v617, %v618
    %v620 = vrot.slane %v619, 1
    %v621 = vadd.f32 %v619, %v620
    %v622 = vand.u32 2147483647, %v500
    %v623 = vand.u32 2147483647, %v501
    %v624 = vand.u32 2147483647, %v502
    %v625 = vand.u32 2147483647, %v503
    %v626 = vand.u32 2147483647, %v504
    %v627 = vand.u32 2147483647, %v505
    %v628 = vand.u32 2147483647, %v506
    %v629 = vand.u32 2147483647, %v507
    %v630 = vadd.f32 %v622, %v623
    %v631 = vadd.f32 %v630, %v624
    %v632 = vadd.f32 %v631, %v625
    %v633 = vadd.f32 %v632, %v626
    %v634 = vadd.f32 %v633, %v627
    %v635 = vadd.f32 %v634, %v628
    %v636 = vadd.f32 %v635, %v629
    %v637 = vrot.slane %v636, 4
    %v638 = vadd.f32 %v636, %v637
    %v639 = vrot.slane %v638, 2
    %v640 = vadd.f32 %v638, %v639
    %v641 = vrot.slane %v640, 1
    %v642 = vadd.f32 %v640, %v641
    %v643 = vmul.f32 %v500, %v500
    %v644 = vmul.f32 %v501, %v501
    %v645 = vmul.f32 %v502, %v502
    %v646 = vmul.f32 %v503, %v503
    %v647 = vmul.f32 %v504, %v504
    %v648 = vmul.f32 %v505, %v505
    %v649 = vmul.f32 %v506, %v506
    %v650 = vmul.f32 %v507, %v507
    %v651 = vadd.f32 %v643, %v644
    %v652 = vadd.f32 %v651, %v645
    %v653 = vadd.f32 %v652, %v646
    %v654 = vadd.f32 %v653, %v647
    %v655 = vadd.f32 %v654, %v648
    %v656 = vadd.f32 %v655, %v649
    %v657 = vadd.f32 %v656, %v650
    %v658 = vrot.slane %v657, 4
    %v659 = vadd.f32 %v657, %v658
    %v660 = vrot.slane %v659, 2
    %v661 = vadd.f32 %v659, %v660
    %v662 = vrot.slane %v661, 1
    %v663 = vadd.f32 %v661, %v662
    %vm664 = vcmask 1040384
    %v665 = vsel %vm664, %v621, %v642
    %vm666 = vcmask 1041408
    %v667 = vsel %vm666, %v665, %v663
    %668 = vst [vmem:[#allocation6] sm:$0x7] %v667
    // Predicated region
    $region14: #{tpu_custom_call.1} parent=1 // pred_check
      _
    $region15: #{tpu_custom_call.1} parent=1 // pred_check_branch
      %670 = sbr.rel (0) target = $region17
    $region16: #{tpu_custom_call.1} parent=1 // pred_region
      %s672 = ssub.s32 1024, 1024
      %673 = vsyncadd [#allocation3], %s672
      %s674 = sshll.u32 [#allocation2], 4
      %s675 = int_to_ptr.vmem [resolvable:$true] %s674
      %680 = dma.vmem_to_hbm [thread:$0]  %s675, 1024, %s3, [#allocation3], 128, 128, 8
    $region17: #{tpu_custom_call.1} parent=1 // pred_fallthru
      _
    // Predicated region
    $region18: #{tpu_custom_call.1} parent=1 // pred_check
      _
    $region19: #{tpu_custom_call.1} parent=1 // pred_check_branch
      %682 = sbr.rel (0) target = $region21
    $region20: #{tpu_custom_call.1} parent=1 // pred_region
      %s684 = ssub.s32 512, 512
      %685 = vsyncadd [#allocation5], %s684
      %s686 = sshll.u32 [#allocation4], 4
      %s687 = int_to_ptr.vmem [resolvable:$true] %s686
      %692 = dma.vmem_to_hbm [thread:$0]  %s687, 512, %s4, [#allocation5], 128, 128, 8
    $region21: #{tpu_custom_call.1} parent=1 // pred_fallthru
      _
    // Predicated region
    $region22: #{tpu_custom_call.1} parent=1 // pred_check
      _
    $region23: #{tpu_custom_call.1} parent=1 // pred_check_branch
      %694 = sbr.rel (0) target = $region25
    $region24: #{tpu_custom_call.1} parent=1 // pred_region
      %s696 = ssub.s32 64, 64
      %697 = vsyncadd [#allocation5], %s696
      %s699 = sshll.u32 [#allocation6], 4
      %s700 = int_to_ptr.vmem [resolvable:$true] %s699
      %702 = dma.vmem_to_hbm [thread:$0]  %s700, 64, %s5, [#allocation5]
    $region25: #{tpu_custom_call.1} parent=1 // pred_fallthru
      _
    // Predicated region
    $region26: #{tpu_custom_call.1} parent=1 // pred_check
      _
    $region27: #{tpu_custom_call.1} parent=1 // pred_check_branch
      %704 = sbr.rel (0) target = $region29
    $region28: #{tpu_custom_call.1} parent=1 // pred_region
      %705 = dma.done [#allocation3], 1024
    $region29: #{tpu_custom_call.1} parent=1 // pred_fallthru
      _
    // Predicated region
    $region30: #{tpu_custom_call.1} parent=1 // pred_check
      _
    $region31: #{tpu_custom_call.1} parent=1 // pred_check_branch
      %707 = sbr.rel (0) target = $region33
    $region32: #{tpu_custom_call.1} parent=1 // pred_region
      %708 = dma.done [#allocation5], 512
    $region33: #{tpu_custom_call.1} parent=1 // pred_fallthru
      _
    // Predicated region
    $region34: #{tpu_custom_call.1} parent=1 // pred_check
      _
    $region35: #{tpu_custom_call.1} parent=1 // pred_check_branch
      %710 = sbr.rel (0) target = $region37
    $region36: #{tpu_custom_call.1} parent=1 // pred_region
      %711 = dma.done [#allocation5], 64
    $region37: #{tpu_custom_call.1} parent=1 // pred_fallthru
      _
    %712 = vsyncpa [#allocation3], 1
    %713 = vsyncpa [#allocation5], 1

</llo_original>
